<compile_context>
chip_gen: v6e
topology: v6e:2x2x1
jax: 0.10.0
libtpu: 0.0.40
codegen_flags: <defaults>
</compile_context>

<pallas_src>
import functools

import jax
import jax.numpy as jnp
from jax.experimental import pallas as pl
from jax.experimental.pallas import tpu as pltpu

LANE = 128          # lane width: every matmul K/N dim is padded to a multiple of this
SUBLANE_BF16 = 16   # bf16 packs 16 rows per vreg -> batch tiles are multiples of 16
MM_DTYPE = jnp.bfloat16


def _round_up(n, m):
    return ((n + m - 1) // m) * m


def _fused_kernel(x_ref, wg_ref, bg_ref, w1_ref, b1_ref, w2_ref, b2_ref, o_ref):
    mm = wg_ref.dtype
    # Cast x inside the kernel (no-op if the wrapper already produced bf16); avoids a
    # separate wrapper-side cast pass when x arrives pre-aligned in f32.
    x = x_ref[...].astype(mm)
    # og_model: Linear(F -> H) + ReLU.  bf16 operands on the MXU, f32 accumulate,
    # f32 bias/ReLU epilogue on the VPU.
    h = jnp.dot(x, wg_ref[...], preferred_element_type=jnp.float32)
    h = jnp.maximum(h + bg_ref[...], 0.0)
    # tail[0]: Linear(H -> I)
    y = jnp.dot(h.astype(mm), w1_ref[...], preferred_element_type=jnp.float32)
    y = y + b1_ref[...]
    # tail[1]: Linear(I -> O); final bias folded into the store epilogue.
    z = jnp.dot(y.astype(mm), w2_ref[...], preferred_element_type=jnp.float32)
    o_ref[...] = (z + b2_ref[...]).astype(o_ref.dtype)


def prepare_params(params):
    """One-time weight/bias prep: zero-pad every matmul K/N dim to a multiple of 128
    and cast the matmul operands to bf16 (biases stay f32).

    Hoisted out of the per-call forward so the full-weight read-f32/write-bf16 HBM
    pass is paid once at model init, not on every call.
    Returns (prepped_params, (F, H, I, O)) with the TRUE dims for slicing/cost.
    """
    wg, bg = params["wg"], params["bg"]
    w1, b1 = params["w1"], params["b1"]
    w2, b2 = params["w2"], params["b2"]
    F, H = wg.shape
    I = w1.shape[1]
    O = w2.shape[1]
    F_p, H_p, I_p, O_p = (_round_up(d, LANE) for d in (F, H, I, O))
    # Zero padding keeps the math exact: padded x cols hit zero weight rows,
    # relu(0 + 0) = 0 for padded hidden cols, and padded output cols stay 0.
    prepped = {
        "wg": jnp.pad(wg, ((0, F_p - F), (0, H_p - H))).astype(MM_DTYPE),
        "w1": jnp.pad(w1, ((0, H_p - H), (0, I_p - I))).astype(MM_DTYPE),
        "w2": jnp.pad(w2, ((0, I_p - I), (0, O_p - O))).astype(MM_DTYPE),
        "bg": jnp.pad(bg, ((0, 0), (0, H_p - H))),   # biases stay f32
        "b1": jnp.pad(b1, ((0, 0), (0, I_p - I))),
        "b2": jnp.pad(b2, ((0, 0), (0, O_p - O))),
    }
    return prepped, (F, H, I, O)


@functools.partial(jax.jit, static_argnames=("dims", "tb"))
def model_plus_output_forward(x, prepped, *, dims, tb=512):
    """x: (B, F) float32.  prepped: output of prepare_params.  dims: true (F, H, I, O)."""
    F, H, I, O = dims
    wg, bg = prepped["wg"], prepped["bg"]
    w1, b1 = prepped["w1"], prepped["b1"]
    w2, b2 = prepped["w2"], prepped["b2"]
    F_p, H_p = wg.shape
    I_p = w1.shape[1]
    O_p = w2.shape[1]

    B = x.shape[0]
    # --- adaptive batch tiling -------------------------------------------------
    # * multiples of 16 rows (bf16 sublane packing)
    # * at least 2 grid steps when the batch allows it, so the "parallel" grid axis
    #   can shard across both v7x TensorCores (free on v5e/v6e)
    # * TB = round_up(cdiv(B, n_tiles), 16) keeps last-tile padding waste small
    B16 = _round_up(B, SUBLANE_BF16)
    n_tiles = max(pl.cdiv(B16, tb), min(2, B16 // SUBLANE_BF16))
    TB = _round_up(pl.cdiv(B16, n_tiles), SUBLANE_BF16)
    B_p = TB * n_tiles

    # --- x handling: avoid extra HBM round trips -------------------------------
    if B_p == B and F_p == F:
        x_in = x                      # no pad needed; cast happens inside the kernel
    else:
        # pad + cast fuse into a single XLA pass; bf16 halves the padded-x bytes written
        x_in = jnp.pad(x, ((0, B_p - B), (0, F_p - F))).astype(MM_DTYPE)

    grid = (n_tiles,)

    def _resident(shape):
        # Grid-invariant operand: constant index_map (DMA'd once, stays in VMEM) and
        # single-buffered so it doesn't occupy 2x its size (matters on 64 MiB v7x VMEM).
        return pl.BlockSpec(shape, lambda i: (0, 0), pipeline_mode=pl.Buffered(1))

    in_specs = [
        pl.BlockSpec((TB, F_p), lambda i: (i, 0)),   # x tile: pipelined over the grid
        _resident((F_p, H_p)),                       # wg
        _resident((1, H_p)),                         # bg
        _resident((H_p, I_p)),                       # w1
        _resident((1, I_p)),                         # b1
        _resident((I_p, O_p)),                       # w2
        _resident((1, O_p)),                         # b2
    ]
    out_specs = pl.BlockSpec((TB, O_p), lambda i: (i, 0))

    # --- VMEM budget computed from the actual footprint ------------------------
    x_bytes = 2 * TB * F_p * x_in.dtype.itemsize          # double-buffered input tile
    w_bytes = (F_p * H_p + H_p * I_p + I_p * O_p) * 2     # bf16, single-buffered
    b_bytes = (H_p + I_p + O_p) * 4                        # f32 biases
    out_bytes = 2 * TB * O_p * 4                           # double-buffered f32 out tile
    interm_bytes = TB * (H_p + I_p + O_p) * 4 + TB * (H_p + I_p) * 2
    footprint = x_bytes + w_bytes + b_bytes + out_bytes + interm_bytes
    vmem_limit = min(max(int(footprint * 1.5) + (4 << 20), 16 << 20), 64 << 20)

    # Cost estimate from TRUE dims (padded dims would overstate work by up to 64x here).
    cost = pl.CostEstimate(
        flops=2 * B * (F * H + H * I + I * O),
        transcendentals=0,
        bytes_accessed=(
            B * F * 4
            + (F * H + H * I + I * O) * 2
            + (H + I + O) * 4
            + B * O * 4
        ),
    )

    out_p = pl.pallas_call(
        _fused_kernel,
        out_shape=jax.ShapeDtypeStruct((B_p, O_p), jnp.float32),
        grid=grid,
        in_specs=in_specs,
        out_specs=out_specs,
        compiler_params=pltpu.CompilerParams(
            dimension_semantics=("parallel",),   # batch tiles are independent
            vmem_limit_bytes=vmem_limit,
        ),
        cost_estimate=cost,
    )(x_in, wg, bg, w1, b1, w2, b2)

    if B_p == B and O_p == O:
        return out_p
    return out_p[:B, :O]


def _init_linear(key, fan_in, fan_out):
    """PyTorch-style uniform(-1/sqrt(fan_in), 1/sqrt(fan_in)) init.
    Weight returned as (fan_in, fan_out) (pre-transposed vs. torch), bias as (1, fan_out)."""
    kw, kb = jax.random.split(key)
    bound = 1.0 / jnp.sqrt(jnp.asarray(fan_in, jnp.float32))
    w = jax.random.uniform(kw, (fan_in, fan_out), jnp.float32, -bound, bound)
    b = jax.random.uniform(kb, (1, fan_out), jnp.float32, -bound, bound)
    return w, b


def _reference_f32(x, params):
    """True f32 Linear semantics (PyTorch parity reference)."""
    hi = jax.lax.Precision.HIGHEST
    h = jnp.maximum(jnp.dot(x, params["wg"], precision=hi) + params["bg"], 0.0)
    y = jnp.dot(h, params["w1"], precision=hi) + params["b1"]
    return jnp.dot(y, params["w2"], precision=hi) + params["b2"]


def _reference_bf16(x, params):
    """Pure-JAX reference using the kernel's exact bf16-operand / f32-accumulate recipe."""
    mm = MM_DTYPE
    h = jnp.dot(x.astype(mm), params["wg"].astype(mm), preferred_element_type=jnp.float32)
    h = jnp.maximum(h + params["bg"], 0.0)
    y = jnp.dot(h.astype(mm), params["w1"].astype(mm),
                preferred_element_type=jnp.float32) + params["b1"]
    return jnp.dot(y.astype(mm), params["w2"].astype(mm),
                   preferred_element_type=jnp.float32) + params["b2"]


if __name__ == "__main__":
    # Shapes consistent with the module:
    #   og_model: Linear(F=32 -> H=32) + ReLU   (so input_shape arg = 32)
    #   tail: Linear(32 -> intermediate_dim=16), Linear(16 -> output_shape=8)
    # NOTE: at these toy sizes the kernel is overhead-dominated; the structure
    # (resident weights, adaptive batch tiles, >=2 grid steps when possible) is
    # what pays off at real batch/hidden sizes.
    B, F, H, I, O = 8, 32, 32, 16, 8

    key = jax.random.PRNGKey(0)
    kx, kg, k1, k2 = jax.random.split(key, 4)

    x = jax.random.normal(kx, (B, F), jnp.float32)
    wg, bg = _init_linear(kg, F, H)
    w1, b1 = _init_linear(k1, H, I)
    w2, b2 = _init_linear(k2, I, O)
    raw = dict(wg=wg, bg=bg, w1=w1, b1=b1, w2=w2, b2=b2)

    # One-time weight prep (pad + bf16 cast) — hoisted out of the per-call forward.
    prepped, dims = prepare_params(raw)
    prepped = jax.block_until_ready(prepped)

    out = model_plus_output_forward(x, prepped, dims=dims)
    out = jax.block_until_ready(out)
    assert out.shape == (B, O)

    # Tight check against the recipe-matched reference (verifies the kernel itself).
    ref_bf16 = _reference_bf16(x, raw)
    assert jnp.allclose(out, ref_bf16, atol=1e-3, rtol=1e-3), \
        "mismatch vs. bf16-recipe reference"

    # Parity check against true f32 Linear semantics (bf16 operand quantization is
    # the only source of divergence; loose tolerance by design).
    ref_f32 = _reference_f32(x, raw)
    assert jnp.allclose(out, ref_f32, atol=5e-2, rtol=5e-2), \
        "mismatch vs. all-f32 (torch-semantics) reference"

    print("KERNEL_OK")
</pallas_src>

<mosaic_0001>
module attributes {stable_mosaic.version = 11 : i64} {
  func.func @_fused_kernel(%arg0: i32, %arg1: memref<16x128xbf16, #tpu.memory_space<vmem>>, %arg2: memref<128x128xbf16, #tpu.memory_space<vmem>>, %arg3: memref<1x128xf32, #tpu.memory_space<vmem>>, %arg4: memref<128x128xbf16, #tpu.memory_space<vmem>>, %arg5: memref<1x128xf32, #tpu.memory_space<vmem>>, %arg6: memref<128x128xbf16, #tpu.memory_space<vmem>>, %arg7: memref<1x128xf32, #tpu.memory_space<vmem>>, %arg8: memref<16x128xf32, #tpu.memory_space<vmem>>) attributes {dimension_semantics = [#tpu.dimension_semantics<parallel>], iteration_bounds = array<i64: 1>, scalar_prefetch = 0 : i64, scratch_operands = 0 : i64, tpu.core_type = #tpu.core_type<tc>, window_params = [{transform_indices = @transform_0, window_bounds = array<i64: 16, 128>}, {pipeline_mode = #tpu.pipeline_mode<synchronous>, transform_indices = @transform_1, window_bounds = array<i64: 128, 128>}, {pipeline_mode = #tpu.pipeline_mode<synchronous>, transform_indices = @transform_2, window_bounds = array<i64: 1, 128>}, {pipeline_mode = #tpu.pipeline_mode<synchronous>, transform_indices = @transform_3, window_bounds = array<i64: 128, 128>}, {pipeline_mode = #tpu.pipeline_mode<synchronous>, transform_indices = @transform_4, window_bounds = array<i64: 1, 128>}, {pipeline_mode = #tpu.pipeline_mode<synchronous>, transform_indices = @transform_5, window_bounds = array<i64: 128, 128>}, {pipeline_mode = #tpu.pipeline_mode<synchronous>, transform_indices = @transform_6, window_bounds = array<i64: 1, 128>}, {transform_indices = @transform_7, window_bounds = array<i64: 16, 128>}]} {
    %c0 = arith.constant 0 : index
    %c0_0 = arith.constant 0 : index
    %0 = vector.load %arg1[%c0, %c0_0] : memref<16x128xbf16, #tpu.memory_space<vmem>>, vector<16x128xbf16>
    %c0_1 = arith.constant 0 : index
    %c0_2 = arith.constant 0 : index
    %1 = vector.load %arg2[%c0_1, %c0_2] : memref<128x128xbf16, #tpu.memory_space<vmem>>, vector<128x128xbf16>
    %cst = arith.constant dense<0.000000e+00> : vector<16x128xf32>
    %2 = tpu.matmul %0, %1, %cst {dimension_numbers = #tpu.dot_dimension_numbers<[1], [0], [0], [1], [0, 0, 1, 1], [], []>} : vector<16x128xbf16>, vector<128x128xbf16>, vector<16x128xf32> -> vector<16x128xf32>
    %c0_3 = arith.constant 0 : index
    %c0_4 = arith.constant 0 : index
    %3 = vector.load %arg3[%c0_3, %c0_4] : memref<1x128xf32, #tpu.memory_space<vmem>>, vector<1x128xf32>
    %4 = vector.broadcast %3 : vector<1x128xf32> to vector<16x128xf32>
    %5 = arith.addf %2, %4 : vector<16x128xf32>
    %cst_5 = arith.constant 0.000000e+00 : f32
    %6 = vector.broadcast %cst_5 : f32 to vector<16x128xf32>
    %7 = arith.maximumf %5, %6 : vector<16x128xf32>
    %8 = arith.truncf %7 : vector<16x128xf32> to vector<16x128xbf16>
    %c0_6 = arith.constant 0 : index
    %c0_7 = arith.constant 0 : index
    %9 = vector.load %arg4[%c0_6, %c0_7] : memref<128x128xbf16, #tpu.memory_space<vmem>>, vector<128x128xbf16>
    %cst_8 = arith.constant dense<0.000000e+00> : vector<16x128xf32>
    %10 = tpu.matmul %8, %9, %cst_8 {dimension_numbers = #tpu.dot_dimension_numbers<[1], [0], [0], [1], [0, 0, 1, 1], [], []>} : vector<16x128xbf16>, vector<128x128xbf16>, vector<16x128xf32> -> vector<16x128xf32>
    %c0_9 = arith.constant 0 : index
    %c0_10 = arith.constant 0 : index
    %11 = vector.load %arg5[%c0_9, %c0_10] : memref<1x128xf32, #tpu.memory_space<vmem>>, vector<1x128xf32>
    %12 = vector.broadcast %11 : vector<1x128xf32> to vector<16x128xf32>
    %13 = arith.addf %10, %12 : vector<16x128xf32>
    %14 = arith.truncf %13 : vector<16x128xf32> to vector<16x128xbf16>
    %c0_11 = arith.constant 0 : index
    %c0_12 = arith.constant 0 : index
    %15 = vector.load %arg6[%c0_11, %c0_12] : memref<128x128xbf16, #tpu.memory_space<vmem>>, vector<128x128xbf16>
    %cst_13 = arith.constant dense<0.000000e+00> : vector<16x128xf32>
    %16 = tpu.matmul %14, %15, %cst_13 {dimension_numbers = #tpu.dot_dimension_numbers<[1], [0], [0], [1], [0, 0, 1, 1], [], []>} : vector<16x128xbf16>, vector<128x128xbf16>, vector<16x128xf32> -> vector<16x128xf32>
    %c0_14 = arith.constant 0 : index
    %c0_15 = arith.constant 0 : index
    %17 = vector.load %arg7[%c0_14, %c0_15] : memref<1x128xf32, #tpu.memory_space<vmem>>, vector<1x128xf32>
    %18 = vector.broadcast %17 : vector<1x128xf32> to vector<16x128xf32>
    %19 = arith.addf %16, %18 : vector<16x128xf32>
    %c0_16 = arith.constant 0 : index
    %c0_17 = arith.constant 0 : index
    %20 = vector.load %arg8[%c0_16, %c0_17] : memref<16x128xf32, #tpu.memory_space<vmem>>, vector<16x128xf32>
    tpu.vector_store %arg8[%c0_16, %c0_17], %19 {strides = array<i32>} : memref<16x128xf32, #tpu.memory_space<vmem>>, vector<16x128xf32>,
    return
  }
  func.func @transform_0(%arg0: i32) -> (i32, i32) {
    %c0_i32 = arith.constant 0 : i32
    %c0_i32_0 = arith.constant 0 : i32
    return %arg0, %c0_i32 : i32, i32
  }
  func.func @transform_1(%arg0: i32) -> (i32, i32) {
    %c0_i32 = arith.constant 0 : i32
    %c0_i32_0 = arith.constant 0 : i32
    %c0_i32_1 = arith.constant 0 : i32
    return %c0_i32, %c0_i32_0 : i32, i32
  }
  func.func @transform_2(%arg0: i32) -> (i32, i32) {
    %c0_i32 = arith.constant 0 : i32
    %c0_i32_0 = arith.constant 0 : i32
    %c0_i32_1 = arith.constant 0 : i32
    return %c0_i32, %c0_i32_0 : i32, i32
  }
  func.func @transform_3(%arg0: i32) -> (i32, i32) {
    %c0_i32 = arith.constant 0 : i32
    %c0_i32_0 = arith.constant 0 : i32
    %c0_i32_1 = arith.constant 0 : i32
    return %c0_i32, %c0_i32_0 : i32, i32
  }
  func.func @transform_4(%arg0: i32) -> (i32, i32) {
    %c0_i32 = arith.constant 0 : i32
    %c0_i32_0 = arith.constant 0 : i32
    %c0_i32_1 = arith.constant 0 : i32
    return %c0_i32, %c0_i32_0 : i32, i32
  }
  func.func @transform_5(%arg0: i32) -> (i32, i32) {
    %c0_i32 = arith.constant 0 : i32
    %c0_i32_0 = arith.constant 0 : i32
    %c0_i32_1 = arith.constant 0 : i32
    return %c0_i32, %c0_i32_0 : i32, i32
  }
  func.func @transform_6(%arg0: i32) -> (i32, i32) {
    %c0_i32 = arith.constant 0 : i32
    %c0_i32_0 = arith.constant 0 : i32
    %c0_i32_1 = arith.constant 0 : i32
    return %c0_i32, %c0_i32_0 : i32, i32
  }
  func.func @transform_7(%arg0: i32) -> (i32, i32) {
    %c0_i32 = arith.constant 0 : i32
    %c0_i32_0 = arith.constant 0 : i32
    return %arg0, %c0_i32 : i32, i32
  }
}

</mosaic_0001>

<llo_original>
// kernel: model_plus_output_forward.1
$region0: #{model_plus_output_forward.1}
  #allocation0 [shape = 'u32[]', space=smem, size = 0x4, offset = 0x4, fixed_abs, tag = 'smem constant byte address 0x4 - core index']
  #allocation1 [shape = 'u32[144,128]{1,0:T(1,128)}', space=vmem, size = 0x12000, scoped, tag = 'internal scratch']
  %s0 = inlined_call_operand.vmem [shape: bf16[16,128], index: 0, kind: input, shape index: {}]
  %s1 = inlined_call_operand.hbm [shape: bf16[128,128], index: 1, kind: input, shape index: {}]
  %s2 = inlined_call_operand.vmem [shape: f32[1,128], index: 2, kind: input, shape index: {}]
  %s3 = inlined_call_operand.hbm [shape: bf16[128,128], index: 3, kind: input, shape index: {}]
  %s4 = inlined_call_operand.vmem [shape: f32[1,128], index: 4, kind: input, shape index: {}]
  %s5 = inlined_call_operand.hbm [shape: bf16[128,128], index: 5, kind: input, shape index: {}]
  %s6 = inlined_call_operand.vmem [shape: f32[1,128], index: 6, kind: input, shape index: {}]
  %s7 = inlined_call_operand.vmem [shape: f32[16,128], index: 7, kind: output, shape index: {}]
  %s8 = sld [smem:[#allocation0]]
  $region50: #{model_plus_output_forward.1} parent=0
    _
  %s10 = ssub.s32 1, %s8
  %s11 = scalar_select 0, %s10, %s8
  $region1: #{model_plus_output_forward.1} parent=0
    #allocation2 [shape = 'u8[32768]{0}', space=vmem, size = 0x8000, scoped, tag = 'input window, operand 1, single buffered']
    #allocation3 [shape = 's32[1]{0}', space=sflag, size = 0x4, scoped, tag = 'scoped memory for model_plus_output_forward.1']
    #allocation4 [shape = 'u8[32768]{0}', space=vmem, size = 0x8000, scoped, tag = 'input window, operand 3, single buffered']
    #allocation5 [shape = 's32[1]{0}', space=sflag, size = 0x4, scoped, tag = 'scoped memory for model_plus_output_forward.1']
    #allocation6 [shape = 'u8[32768]{0}', space=vmem, size = 0x8000, scoped, tag = 'input window, operand 5, single buffered']
    %12 = vsyncpa [#allocation3], 0
    %13 = vsyncpa [#allocation5], 0
    // Predicated region
    $region2: #{model_plus_output_forward.1} parent=1 // pred_check
      _
    $region3: #{model_plus_output_forward.1} parent=1 // pred_check_branch
      %15 = sbr.rel (0) target = $region5
    $region4: #{model_plus_output_forward.1} parent=1 // pred_region
      _
    $region5: #{model_plus_output_forward.1} parent=1 // pred_fallthru
      _
    // Predicated region
    $region6: #{model_plus_output_forward.1} parent=1 // pred_check
      _
    $region7: #{model_plus_output_forward.1} parent=1 // pred_check_branch
      %17 = sbr.rel (0) target = $region9
    $region8: #{model_plus_output_forward.1} parent=1 // pred_region
      %s19 = ssub.s32 1024, 1024
      %20 = vsyncadd [#allocation3], %s19
      %s21 = sshll.u32 [#allocation2], 4
      %s22 = int_to_ptr.vmem [resolvable:$true] %s21
      %27 = dma.hbm_to_vmem [thread:$0]  %s1, 1024, %s22, [#allocation3], 64, 64, 4
    $region9: #{model_plus_output_forward.1} parent=1 // pred_fallthru
      _
    // Predicated region
    $region10: #{model_plus_output_forward.1} parent=1 // pred_check
      _
    $region11: #{model_plus_output_forward.1} parent=1 // pred_check_branch
      %29 = sbr.rel (0) target = $region13
    $region12: #{model_plus_output_forward.1} parent=1 // pred_region
      _
    $region13: #{model_plus_output_forward.1} parent=1 // pred_fallthru
      _
    // Predicated region
    $region14: #{model_plus_output_forward.1} parent=1 // pred_check
      _
    $region15: #{model_plus_output_forward.1} parent=1 // pred_check_branch
      %31 = sbr.rel (0) target = $region17
    $region16: #{model_plus_output_forward.1} parent=1 // pred_region
      %s33 = ssub.s32 1024, 1024
      %34 = vsyncadd [#allocation5], %s33
      %s35 = sshll.u32 [#allocation4], 4
      %s36 = int_to_ptr.vmem [resolvable:$true] %s35
      %41 = dma.hbm_to_vmem [thread:$0]  %s3, 1024, %s36, [#allocation5], 64, 64, 4
    $region17: #{model_plus_output_forward.1} parent=1 // pred_fallthru
      _
    // Predicated region
    $region18: #{model_plus_output_forward.1} parent=1 // pred_check
      _
    $region19: #{model_plus_output_forward.1} parent=1 // pred_check_branch
      %43 = sbr.rel (0) target = $region21
    $region20: #{model_plus_output_forward.1} parent=1 // pred_region
      _
    $region21: #{model_plus_output_forward.1} parent=1 // pred_fallthru
      _
    // Predicated region
    $region22: #{model_plus_output_forward.1} parent=1 // pred_check
      _
    $region23: #{model_plus_output_forward.1} parent=1 // pred_check_branch
      %45 = sbr.rel (0) target = $region25
    $region24: #{model_plus_output_forward.1} parent=1 // pred_region
      %s47 = ssub.s32 1024, 1024
      %48 = vsyncadd [#allocation5], %s47
      %s49 = sshll.u32 [#allocation6], 4
      %s50 = int_to_ptr.vmem [resolvable:$true] %s49
      %55 = dma.hbm_to_vmem [thread:$0]  %s5, 1024, %s50, [#allocation5], 64, 64, 4
    $region25: #{model_plus_output_forward.1} parent=1 // pred_fallthru
      _
    // Predicated region
    $region26: #{model_plus_output_forward.1} parent=1 // pred_check
      _
    $region27: #{model_plus_output_forward.1} parent=1 // pred_check_branch
      %57 = sbr.rel (0) target = $region29
    $region28: #{model_plus_output_forward.1} parent=1 // pred_region
      _
    $region29: #{model_plus_output_forward.1} parent=1 // pred_fallthru
      _
    // Predicated region
    $region30: #{model_plus_output_forward.1} parent=1 // pred_check
      _
    $region31: #{model_plus_output_forward.1} parent=1 // pred_check_branch
      %59 = sbr.rel (0) target = $region33
    $region32: #{model_plus_output_forward.1} parent=1 // pred_region
      %60 = dma.done [#allocation3], 1024
    $region33: #{model_plus_output_forward.1} parent=1 // pred_fallthru
      _
    // Predicated region
    $region34: #{model_plus_output_forward.1} parent=1 // pred_check
      _
    $region35: #{model_plus_output_forward.1} parent=1 // pred_check_branch
      %62 = sbr.rel (0) target = $region37
    $region36: #{model_plus_output_forward.1} parent=1 // pred_region
      %63 = dma.done [#allocation5], 1024
    $region37: #{model_plus_output_forward.1} parent=1 // pred_fallthru
      _
    // Predicated region
    $region38: #{model_plus_output_forward.1} parent=1 // pred_check
      _
    $region39: #{model_plus_output_forward.1} parent=1 // pred_check_branch
      %65 = sbr.rel (0) target = $region41
    $region40: #{model_plus_output_forward.1} parent=1 // pred_region
      %66 = dma.done [#allocation5], 1024
    $region41: #{model_plus_output_forward.1} parent=1 // pred_fallthru
      _
    %v68 = vld [vmem:[%s0] sm:$0xf]
    %v69 = vld [vmem:[%s0 + $0x4] sm:$0xf]
    %v70 = vld [vmem:[#allocation2] sm:$0xf]
    %v71 = vld [vmem:[#allocation2 + $0x4] sm:$0xf]
    %v72 = vld [vmem:[#allocation2 + $0x8] sm:$0xf]
    %v73 = vld [vmem:[#allocation2 + $0xc] sm:$0xf]
    %v74 = vld [vmem:[#allocation2 + $0x10] sm:$0xf]
    %v75 = vld [vmem:[#allocation2 + $0x14] sm:$0xf]
    %v76 = vld [vmem:[#allocation2 + $0x18] sm:$0xf]
    %v77 = vld [vmem:[#allocation2 + $0x1c] sm:$0xf]
    %v78 = vld [vmem:[#allocation2 + $0x20] sm:$0xf]
    %v79 = vld [vmem:[#allocation2 + $0x24] sm:$0xf]
    %v80 = vld [vmem:[#allocation2 + $0x28] sm:$0xf]
    %v81 = vld [vmem:[#allocation2 + $0x2c] sm:$0xf]
    %v82 = vld [vmem:[#allocation2 + $0x30] sm:$0xf]
    %v83 = vld [vmem:[#allocation2 + $0x34] sm:$0xf]
    %v84 = vld [vmem:[#allocation2 + $0x38] sm:$0xf]
    %v85 = vld [vmem:[#allocation2 + $0x3c] sm:$0xf]
    %v86 = vld [vmem:[%s2] sm:$0x1]
    %v88 = vlaneseq
    %v89 = vshrl.u32 %v88, 7
    %v90 = vsub.s32 0, %v89
    %v91 = vrot.slane %v86, %v90
    %v95 = vunpack.c.l.b16 %v68
    %v96 = vunpack.c.l.b16 %v69
    %v97 = vpack.c.b16 %v96, %v95
    %v115 = vunpack.c.l.b16 %v70
    %v116 = vunpack.c.l.b16 %v71
    %v117 = vunpack.c.l.b16 %v72
    %v118 = vunpack.c.l.b16 %v73
    %v119 = vunpack.c.l.b16 %v74
    %v120 = vunpack.c.l.b16 %v75
    %v121 = vunpack.c.l.b16 %v76
    %v122 = vunpack.c.l.b16 %v77
    %v123 = vunpack.c.l.b16 %v78
    %v124 = vunpack.c.l.b16 %v79
    %v125 = vunpack.c.l.b16 %v80
    %v126 = vunpack.c.l.b16 %v81
    %v127 = vunpack.c.l.b16 %v82
    %v128 = vunpack.c.l.b16 %v83
    %v129 = vunpack.c.l.b16 %v84
    %v130 = vunpack.c.l.b16 %v85
    %v131 = vpack.c.b16 %v116, %v115
    %v132 = vpack.c.b16 %v118, %v117
    %v133 = vpack.c.b16 %v120, %v119
    %v134 = vpack.c.b16 %v122, %v121
    %v135 = vpack.c.b16 %v124, %v123
    %v136 = vpack.c.b16 %v126, %v125
    %v137 = vpack.c.b16 %v128, %v127
    %v138 = vpack.c.b16 %v130, %v129
    %147 = vmatprep.subr.bf16.mxu0 0
    %148 = vmatpush1.bf16.msra.mxu0 %v138
    %149 = vmatprep.subr.bf16.mxu0 0
    %150 = vmatpush1.bf16.msra.mxu0 %v137
    %151 = vmatprep.subr.bf16.mxu0 0
    %152 = vmatpush1.bf16.msra.mxu0 %v136
    %153 = vmatprep.subr.bf16.mxu0 0
    %154 = vmatpush1.bf16.msra.mxu0 %v135
    %155 = vmatprep.subr.bf16.mxu0 0
    %156 = vmatpush1.bf16.msra.mxu0 %v134
    %157 = vmatprep.subr.bf16.mxu0 0
    %158 = vmatpush1.bf16.msra.mxu0 %v133
    %159 = vmatprep.subr.bf16.mxu0 0
    %160 = vmatpush1.bf16.msra.mxu0 %v132
    %161 = vmatprep.subr.bf16.mxu0 0
    %162 = vmatpush1.bf16.msra.mxu0 %v131
    %163 = vmatprep.subr.bf16.mxu0 0
    %164 = vmatpush2.bf16.msra.mxu0 0
    %165 = vmatprep.subr.bf16.mxu0 0
    %166 = vmatpush2.bf16.msra.mxu0 0
    %167 = vmatprep.subr.bf16.mxu0 0
    %168 = vmatpush2.bf16.msra.mxu0 0
    %169 = vmatprep.subr.bf16.mxu0 0
    %170 = vmatpush2.bf16.msra.mxu0 0
    %171 = vmatprep.subr.bf16.mxu0 0
    %172 = vmatpush2.bf16.msra.mxu0 0
    %173 = vmatprep.subr.bf16.mxu0 0
    %174 = vmatpush2.bf16.msra.mxu0 0
    %175 = vmatprep.subr.bf16.mxu0 0
    %176 = vmatpush2.bf16.msra.mxu0 0
    %177 = vmatprep.subr.bf16.mxu0 0
    %178 = vmatpush2.bf16.msra.mxu0 0
    %179 = vmatprep.mubr.bf16.mxu0 0
    %180 = vmatmul.mubr.bf16.gmra.mxu0 %v97
    %v181 = vpop.f32.mrf.mxu0
    %v182 = vadd.f32 %v91, %v181
    %v183 = vpop.f32.mrf.mxu0
    %v184 = vpop.f32.mrf.mxu0
    %v185 = vadd.f32 %v91, %v184
    %v186 = vpop.f32.mrf.mxu0
    %187 = vdwg.mxu0
    %v188 = vmax.f32 %v182, 0.0
    %v189 = vmax.f32 %v185, 0.0
    %v190 = vpack.c.bf16 %v189, %v188
    %v191 = vld [vmem:[#allocation4] sm:$0xf]
    %v192 = vld [vmem:[#allocation4 + $0x4] sm:$0xf]
    %v193 = vld [vmem:[#allocation4 + $0x8] sm:$0xf]
    %v194 = vld [vmem:[#allocation4 + $0xc] sm:$0xf]
    %v195 = vld [vmem:[#allocation4 + $0x10] sm:$0xf]
    %v196 = vld [vmem:[#allocation4 + $0x14] sm:$0xf]
    %v197 = vld [vmem:[#allocation4 + $0x18] sm:$0xf]
    %v198 = vld [vmem:[#allocation4 + $0x1c] sm:$0xf]
    %v199 = vld [vmem:[#allocation4 + $0x20] sm:$0xf]
    %v200 = vld [vmem:[#allocation4 + $0x24] sm:$0xf]
    %v201 = vld [vmem:[#allocation4 + $0x28] sm:$0xf]
    %v202 = vld [vmem:[#allocation4 + $0x2c] sm:$0xf]
    %v203 = vld [vmem:[#allocation4 + $0x30] sm:$0xf]
    %v204 = vld [vmem:[#allocation4 + $0x34] sm:$0xf]
    %v205 = vld [vmem:[#allocation4 + $0x38] sm:$0xf]
    %v206 = vld [vmem:[#allocation4 + $0x3c] sm:$0xf]
    %v207 = vld [vmem:[%s4] sm:$0x1]
    %v209 = vlaneseq
    %v210 = vshrl.u32 %v209, 7
    %v211 = vsub.s32 0, %v210
    %v212 = vrot.slane %v207, %v211
    %v230 = vunpack.c.l.b16 %v191
    %v231 = vunpack.c.l.b16 %v192
    %v232 = vunpack.c.l.b16 %v193
    %v233 = vunpack.c.l.b16 %v194
    %v234 = vunpack.c.l.b16 %v195
    %v235 = vunpack.c.l.b16 %v196
    %v236 = vunpack.c.l.b16 %v197
    %v237 = vunpack.c.l.b16 %v198
    %v238 = vunpack.c.l.b16 %v199
    %v239 = vunpack.c.l.b16 %v200
    %v240 = vunpack.c.l.b16 %v201
    %v241 = vunpack.c.l.b16 %v202
    %v242 = vunpack.c.l.b16 %v203
    %v243 = vunpack.c.l.b16 %v204
    %v244 = vunpack.c.l.b16 %v205
    %v245 = vunpack.c.l.b16 %v206
    %v246 = vpack.c.b16 %v231, %v230
    %v247 = vpack.c.b16 %v233, %v232
    %v248 = vpack.c.b16 %v235, %v234
    %v249 = vpack.c.b16 %v237, %v236
    %v250 = vpack.c.b16 %v239, %v238
    %v251 = vpack.c.b16 %v241, %v240
    %v252 = vpack.c.b16 %v243, %v242
    %v253 = vpack.c.b16 %v245, %v244
    %262 = vmatprep.subr.bf16.mxu0 0
    %263 = vmatpush1.bf16.msra.mxu0 %v253
    %264 = vmatprep.subr.bf16.mxu0 0
    %265 = vmatpush1.bf16.msra.mxu0 %v252
    %266 = vmatprep.subr.bf16.mxu0 0
    %267 = vmatpush1.bf16.msra.mxu0 %v251
    %268 = vmatprep.subr.bf16.mxu0 0
    %269 = vmatpush1.bf16.msra.mxu0 %v250
    %270 = vmatprep.subr.bf16.mxu0 0
    %271 = vmatpush1.bf16.msra.mxu0 %v249
    %272 = vmatprep.subr.bf16.mxu0 0
    %273 = vmatpush1.bf16.msra.mxu0 %v248
    %274 = vmatprep.subr.bf16.mxu0 0
    %275 = vmatpush1.bf16.msra.mxu0 %v247
    %276 = vmatprep.subr.bf16.mxu0 0
    %277 = vmatpush1.bf16.msra.mxu0 %v246
    %278 = vmatprep.subr.bf16.mxu0 0
    %279 = vmatpush2.bf16.msra.mxu0 0
    %280 = vmatprep.subr.bf16.mxu0 0
    %281 = vmatpush2.bf16.msra.mxu0 0
    %282 = vmatprep.subr.bf16.mxu0 0
    %283 = vmatpush2.bf16.msra.mxu0 0
    %284 = vmatprep.subr.bf16.mxu0 0
    %285 = vmatpush2.bf16.msra.mxu0 0
    %286 = vmatprep.subr.bf16.mxu0 0
    %287 = vmatpush2.bf16.msra.mxu0 0
    %288 = vmatprep.subr.bf16.mxu0 0
    %289 = vmatpush2.bf16.msra.mxu0 0
    %290 = vmatprep.subr.bf16.mxu0 0
    %291 = vmatpush2.bf16.msra.mxu0 0
    %292 = vmatprep.subr.bf16.mxu0 0
    %293 = vmatpush2.bf16.msra.mxu0 0
    %294 = vmatprep.mubr.bf16.mxu0 0
    %295 = vmatmul.mubr.bf16.gmra.mxu0 %v190
    %v296 = vpop.f32.mrf.mxu0
    %v297 = vadd.f32 %v212, %v296
    %v298 = vpop.f32.mrf.mxu0
    %v299 = vpop.f32.mrf.mxu0
    %v300 = vadd.f32 %v212, %v299
    %v301 = vpop.f32.mrf.mxu0
    %302 = vdwg.mxu0
    %v303 = vpack.c.bf16 %v300, %v297
    %v304 = vld [vmem:[#allocation6] sm:$0xf]
    %v305 = vld [vmem:[#allocation6 + $0x4] sm:$0xf]
    %v306 = vld [vmem:[#allocation6 + $0x8] sm:$0xf]
    %v307 = vld [vmem:[#allocation6 + $0xc] sm:$0xf]
    %v308 = vld [vmem:[#allocation6 + $0x10] sm:$0xf]
    %v309 = vld [vmem:[#allocation6 + $0x14] sm:$0xf]
    %v310 = vld [vmem:[#allocation6 + $0x18] sm:$0xf]
    %v311 = vld [vmem:[#allocation6 + $0x1c] sm:$0xf]
    %v312 = vld [vmem:[#allocation6 + $0x20] sm:$0xf]
    %v313 = vld [vmem:[#allocation6 + $0x24] sm:$0xf]
    %v314 = vld [vmem:[#allocation6 + $0x28] sm:$0xf]
    %v315 = vld [vmem:[#allocation6 + $0x2c] sm:$0xf]
    %v316 = vld [vmem:[#allocation6 + $0x30] sm:$0xf]
    %v317 = vld [vmem:[#allocation6 + $0x34] sm:$0xf]
    %v318 = vld [vmem:[#allocation6 + $0x38] sm:$0xf]
    %v319 = vld [vmem:[#allocation6 + $0x3c] sm:$0xf]
    %v320 = vld [vmem:[%s6] sm:$0x1]
    %v322 = vlaneseq
    %v323 = vshrl.u32 %v322, 7
    %v324 = vsub.s32 0, %v323
    %v325 = vrot.slane %v320, %v324
    %v343 = vunpack.c.l.b16 %v304
    %v344 = vunpack.c.l.b16 %v305
    %v345 = vunpack.c.l.b16 %v306
    %v346 = vunpack.c.l.b16 %v307
    %v347 = vunpack.c.l.b16 %v308
    %v348 = vunpack.c.l.b16 %v309
    %v349 = vunpack.c.l.b16 %v310
    %v350 = vunpack.c.l.b16 %v311
    %v351 = vunpack.c.l.b16 %v312
    %v352 = vunpack.c.l.b16 %v313
    %v353 = vunpack.c.l.b16 %v314
    %v354 = vunpack.c.l.b16 %v315
    %v355 = vunpack.c.l.b16 %v316
    %v356 = vunpack.c.l.b16 %v317
    %v357 = vunpack.c.l.b16 %v318
    %v358 = vunpack.c.l.b16 %v319
    %v359 = vpack.c.b16 %v344, %v343
    %v360 = vpack.c.b16 %v346, %v345
    %v361 = vpack.c.b16 %v348, %v347
    %v362 = vpack.c.b16 %v350, %v349
    %v363 = vpack.c.b16 %v352, %v351
    %v364 = vpack.c.b16 %v354, %v353
    %v365 = vpack.c.b16 %v356, %v355
    %v366 = vpack.c.b16 %v358, %v357
    %375 = vmatprep.subr.bf16.mxu0 0
    %376 = vmatpush1.bf16.msra.mxu0 %v366
    %377 = vmatprep.subr.bf16.mxu0 0
    %378 = vmatpush1.bf16.msra.mxu0 %v365
    %379 = vmatprep.subr.bf16.mxu0 0
    %380 = vmatpush1.bf16.msra.mxu0 %v364
    %381 = vmatprep.subr.bf16.mxu0 0
    %382 = vmatpush1.bf16.msra.mxu0 %v363
    %383 = vmatprep.subr.bf16.mxu0 0
    %384 = vmatpush1.bf16.msra.mxu0 %v362
    %385 = vmatprep.subr.bf16.mxu0 0
    %386 = vmatpush1.bf16.msra.mxu0 %v361
    %387 = vmatprep.subr.bf16.mxu0 0
    %388 = vmatpush1.bf16.msra.mxu0 %v360
    %389 = vmatprep.subr.bf16.mxu0 0
    %390 = vmatpush1.bf16.msra.mxu0 %v359
    %391 = vmatprep.subr.bf16.mxu0 0
    %392 = vmatpush2.bf16.msra.mxu0 0
    %393 = vmatprep.subr.bf16.mxu0 0
    %394 = vmatpush2.bf16.msra.mxu0 0
    %395 = vmatprep.subr.bf16.mxu0 0
    %396 = vmatpush2.bf16.msra.mxu0 0
    %397 = vmatprep.subr.bf16.mxu0 0
    %398 = vmatpush2.bf16.msra.mxu0 0
    %399 = vmatprep.subr.bf16.mxu0 0
    %400 = vmatpush2.bf16.msra.mxu0 0
    %401 = vmatprep.subr.bf16.mxu0 0
    %402 = vmatpush2.bf16.msra.mxu0 0
    %403 = vmatprep.subr.bf16.mxu0 0
    %404 = vmatpush2.bf16.msra.mxu0 0
    %405 = vmatprep.subr.bf16.mxu0 0
    %406 = vmatpush2.bf16.msra.mxu0 0
    %407 = vmatprep.mubr.bf16.mxu0 0
    %408 = vmatmul.mubr.bf16.gmra.mxu0 %v303
    %v409 = vpop.f32.mrf.mxu0
    %v410 = vadd.f32 %v325, %v409
    %v411 = vpop.f32.mrf.mxu0
    %v412 = vpop.f32.mrf.mxu0
    %v413 = vadd.f32 %v325, %v412
    %v414 = vpop.f32.mrf.mxu0
    %415 = vdwg.mxu0
    %416 = vst [vmem:[%s7] sm:$0xff] %v410
    %417 = vst [vmem:[%s7 + $0x8] sm:$0xff] %v413
    // Predicated region
    $region42: #{model_plus_output_forward.1} parent=1 // pred_check
      _
    $region43: #{model_plus_output_forward.1} parent=1 // pred_check_branch
      %419 = sbr.rel (0) target = $region45
    $region44: #{model_plus_output_forward.1} parent=1 // pred_region
      _
    $region45: #{model_plus_output_forward.1} parent=1 // pred_fallthru
      _
    // Predicated region
    $region46: #{model_plus_output_forward.1} parent=1 // pred_check
      _
    $region47: #{model_plus_output_forward.1} parent=1 // pred_check_branch
      %421 = sbr.rel (0) target = $region49
    $region48: #{model_plus_output_forward.1} parent=1 // pred_region
      _
    $region49: #{model_plus_output_forward.1} parent=1 // pred_fallthru
      _
    %422 = vsyncpa [#allocation3], 1
    %423 = vsyncpa [#allocation5], 1

</llo_original>
